<compile_context>
chip_gen: v7x
topology: tpu7x:2x2x1
jax: 0.10.0
libtpu: 0.0.40
codegen_flags: <defaults>
</compile_context>

<pallas_src>
import functools

import jax
import jax.numpy as jnp
from jax import lax
from jax.experimental import pallas as pl
from jax.experimental.pallas import tpu as pltpu


def _prenorm_qkv_kernel(q_ref, k_ref, v_ref,
                        gq_ref, bq_ref, gk_ref, bk_ref, gv_ref, bv_ref,
                        oq_ref, ok_ref, ov_ref, *, eps):
    # q/k/v refs: (TM, D)   gamma/beta refs: (1, D)   outputs: (TM, D)
    def _ln(x_ref, g_ref, b_ref, o_ref):
        x = x_ref[...].astype(jnp.float32)
        mean = jnp.mean(x, axis=-1, keepdims=True)
        xc = x - mean
        var = jnp.mean(xc * xc, axis=-1, keepdims=True)
        inv = lax.rsqrt(var + eps)                 # EUP rsqrt, off the VALU path
        y = xc * inv
        y = y * g_ref[...].astype(jnp.float32) + b_ref[...].astype(jnp.float32)
        o_ref[...] = y.astype(o_ref.dtype)

    _ln(q_ref, gq_ref, bq_ref, oq_ref)
    _ln(k_ref, gk_ref, bk_ref, ok_ref)
    _ln(v_ref, gv_ref, bv_ref, ov_ref)


def _pick_tm(m, d, itemsize, target_block_bytes=2 << 20, max_rows=8192):
    """Row tile sized by bytes (~2 MiB per input block), rounded to the
    dtype's packed-sublane multiple so tiles are unpadded / stores unmasked."""
    sublane = max(8, 32 // max(itemsize, 1))       # 8 f32, 16 bf16, 32 int8/fp8
    tm = max(target_block_bytes // max(d * itemsize, 1), 1)
    tm = min(tm, m, max_rows)
    if tm < m:
        if m >= sublane:
            tm = max((tm // sublane) * sublane, sublane)
        else:
            tm = m
    return tm


def prenorm_qkv(q, k, v, gamma_q, beta_q, gamma_k, beta_k, gamma_v, beta_v,
                fn=None, eps=1e-5):
    """PreNorm_qkv forward. q/k/v: (..., D). Returns fn(nq, nk, nv) (or the
    tuple of normalized tensors if fn is None)."""
    assert q.shape == k.shape == v.shape
    d = q.shape[-1]
    lead_shape = q.shape[:-1]
    m = 1
    for s in lead_shape:
        m *= s

    q2 = q.reshape(m, d)
    k2 = k.reshape(m, d)
    v2 = v.reshape(m, d)
    gq = gamma_q.reshape(1, d)
    bq = beta_q.reshape(1, d)
    gk = gamma_k.reshape(1, d)
    bk = beta_k.reshape(1, d)
    gv = gamma_v.reshape(1, d)
    bv = beta_v.reshape(1, d)

    itemsize = q.dtype.itemsize
    tm = _pick_tm(m, d, itemsize)
    n_tiles = pl.cdiv(m, tm)
    block_bytes = tm * d * itemsize

    # VMEM budget: (3 inputs + 3 outputs) x double-buffered x block, plus the
    # resident affine params and some slack.  Stays < 40 MiB -> safe on v7x.
    vmem_bytes = 12 * block_bytes + 6 * d * itemsize + (4 << 20)
    vmem_bytes = int(min(max(vmem_bytes, 16 << 20), 100 << 20))

    # ~9 flops/element for norm + affine; one rsqrt per row per tensor.
    cost = pl.CostEstimate(
        flops=9 * 3 * m * d,
        transcendentals=3 * m,
        bytes_accessed=2 * 3 * m * d * itemsize + 2 * 3 * d * itemsize,
    )

    act_spec_in = pl.BlockSpec((tm, d), lambda i: (i, 0))
    act_spec_out = pl.BlockSpec((tm, d), lambda i: (i, 0))
    par_spec = pl.BlockSpec((1, d), lambda i: (0, 0))   # loaded once, VMEM-resident

    out_shape = jax.ShapeDtypeStruct((m, d), q.dtype)

    nq2, nk2, nv2 = pl.pallas_call(
        functools.partial(_prenorm_qkv_kernel, eps=eps),
        out_shape=(out_shape, out_shape, out_shape),
        grid=(n_tiles,),
        in_specs=[
            act_spec_in, act_spec_in, act_spec_in,
            par_spec, par_spec, par_spec, par_spec, par_spec, par_spec,
        ],
        out_specs=(act_spec_out, act_spec_out, act_spec_out),
        compiler_params=pltpu.CompilerParams(
            # single flat row-tile axis -> even megacore split on v7x
            dimension_semantics=("parallel",),
            vmem_limit_bytes=vmem_bytes,
        ),
        cost_estimate=cost,
    )(q2, k2, v2, gq, bq, gk, bk, gv, bv)

    nq = nq2.reshape(*lead_shape, d)
    nk = nk2.reshape(*lead_shape, d)
    nv = nv2.reshape(*lead_shape, d)

    # TODO(synk): `self.fn` is an arbitrary wrapped nn.Module; applied here as
    # a plain JAX callable rather than fused into the Pallas kernel.
    if fn is None:
        return nq, nk, nv
    return fn(nq, nk, nv)


def _layernorm_ref(x, g, b, eps=1e-5):
    mean = x.mean(-1, keepdims=True)
    var = ((x - mean) ** 2).mean(-1, keepdims=True)
    return (x - mean) / jnp.sqrt(var + eps) * g + b


def _attention_fn(q, k, v):
    # simple example `fn` (scaled dot-product attention) in plain JAX
    d = q.shape[-1]
    scores = jnp.einsum("btd,bsd->bts", q, k) / jnp.sqrt(jnp.float32(d))
    w = jax.nn.softmax(scores, axis=-1)
    return jnp.einsum("bts,bsd->btd", w, v).astype(q.dtype)


if __name__ == "__main__":
    # small shapes consistent with the module: (batch, seq, dim), dim lane-dense
    B, T, D = 2, 8, 128

    key = jax.random.PRNGKey(0)
    kq, kk, kv, kg, kb = jax.random.split(key, 5)
    q = jax.random.normal(kq, (B, T, D), dtype=jnp.float32)
    k = jax.random.normal(kk, (B, T, D), dtype=jnp.float32)
    v = jax.random.normal(kv, (B, T, D), dtype=jnp.float32)

    # per-stream LayerNorm affine params (PyTorch init is ones/zeros; use
    # non-trivial values so the affine path is actually exercised)
    gammas = 1.0 + 0.1 * jax.random.normal(kg, (3, D), dtype=jnp.float32)
    betas = 0.1 * jax.random.normal(kb, (3, D), dtype=jnp.float32)
    gq, gk, gv = gammas[0], gammas[1], gammas[2]
    bq, bk, bv = betas[0], betas[1], betas[2]

    # run the kernel (normalized outputs) and the full forward with an example fn
    nq, nk, nv = prenorm_qkv(q, k, v, gq, bq, gk, bk, gv, bv, fn=None)
    y = prenorm_qkv(q, k, v, gq, bq, gk, bk, gv, bv, fn=_attention_fn)
    jax.block_until_ready((nq, nk, nv, y))

    # reference check in plain JAX
    rq = _layernorm_ref(q, gq, bq)
    rk = _layernorm_ref(k, gk, bk)
    rv = _layernorm_ref(v, gv, bv)
    ry = _attention_fn(rq, rk, rv)

    assert nq.shape == (B, T, D) and y.shape == (B, T, D)
    assert jnp.allclose(nq, rq, atol=1e-5, rtol=1e-5)
    assert jnp.allclose(nk, rk, atol=1e-5, rtol=1e-5)
    assert jnp.allclose(nv, rv, atol=1e-5, rtol=1e-5)
    assert jnp.allclose(y, ry, atol=1e-4, rtol=1e-4)

    print("KERNEL_OK")
</pallas_src>

<mosaic_0001>
module attributes {stable_mosaic.version = 11 : i64} {
  func.func @_prenorm_qkv_kernel(%arg0: i32, %arg1: memref<16x128xf32, #tpu.memory_space<vmem>>, %arg2: memref<16x128xf32, #tpu.memory_space<vmem>>, %arg3: memref<16x128xf32, #tpu.memory_space<vmem>>, %arg4: memref<1x128xf32, #tpu.memory_space<vmem>>, %arg5: memref<1x128xf32, #tpu.memory_space<vmem>>, %arg6: memref<1x128xf32, #tpu.memory_space<vmem>>, %arg7: memref<1x128xf32, #tpu.memory_space<vmem>>, %arg8: memref<1x128xf32, #tpu.memory_space<vmem>>, %arg9: memref<1x128xf32, #tpu.memory_space<vmem>>, %arg10: memref<16x128xf32, #tpu.memory_space<vmem>>, %arg11: memref<16x128xf32, #tpu.memory_space<vmem>>, %arg12: memref<16x128xf32, #tpu.memory_space<vmem>>) attributes {dimension_semantics = [#tpu.dimension_semantics<parallel>], iteration_bounds = array<i64: 1>, scalar_prefetch = 0 : i64, scratch_operands = 0 : i64, tpu.core_type = #tpu.core_type<tc>, window_params = [{transform_indices = @transform_0, window_bounds = array<i64: 16, 128>}, {transform_indices = @transform_1, window_bounds = array<i64: 16, 128>}, {transform_indices = @transform_2, window_bounds = array<i64: 16, 128>}, {pipeline_mode = #tpu.pipeline_mode<synchronous>, transform_indices = @transform_3, window_bounds = array<i64: 1, 128>}, {pipeline_mode = #tpu.pipeline_mode<synchronous>, transform_indices = @transform_4, window_bounds = array<i64: 1, 128>}, {pipeline_mode = #tpu.pipeline_mode<synchronous>, transform_indices = @transform_5, window_bounds = array<i64: 1, 128>}, {pipeline_mode = #tpu.pipeline_mode<synchronous>, transform_indices = @transform_6, window_bounds = array<i64: 1, 128>}, {pipeline_mode = #tpu.pipeline_mode<synchronous>, transform_indices = @transform_7, window_bounds = array<i64: 1, 128>}, {pipeline_mode = #tpu.pipeline_mode<synchronous>, transform_indices = @transform_8, window_bounds = array<i64: 1, 128>}, {transform_indices = @transform_9, window_bounds = array<i64: 16, 128>}, {transform_indices = @transform_10, window_bounds = array<i64: 16, 128>}, {transform_indices = @transform_11, window_bounds = array<i64: 16, 128>}]} {
    %c0 = arith.constant 0 : index
    %c0_0 = arith.constant 0 : index
    %0 = vector.load %arg1[%c0, %c0_0] : memref<16x128xf32, #tpu.memory_space<vmem>>, vector<16x128xf32>
    %cst = arith.constant dense<0.000000e+00> : vector<16xf32>
    %1 = vector.multi_reduction <add>, %0, %cst [1] : vector<16x128xf32> to vector<16xf32>
    %2 = vector.shape_cast %1 : vector<16xf32> to vector<16x1xf32>
    %cst_1 = arith.constant 1.280000e+02 : f32
    %3 = vector.broadcast %cst_1 : f32 to vector<16x1xf32>
    %4 = arith.divf %2, %3 : vector<16x1xf32>
    %5 = vector.broadcast %4 : vector<16x1xf32> to vector<16x128xf32>
    %6 = arith.subf %0, %5 : vector<16x128xf32>
    %7 = arith.mulf %6, %6 : vector<16x128xf32>
    %cst_2 = arith.constant dense<0.000000e+00> : vector<16xf32>
    %8 = vector.multi_reduction <add>, %7, %cst_2 [1] : vector<16x128xf32> to vector<16xf32>
    %9 = vector.shape_cast %8 : vector<16xf32> to vector<16x1xf32>
    %cst_3 = arith.constant 1.280000e+02 : f32
    %10 = vector.broadcast %cst_3 : f32 to vector<16x1xf32>
    %11 = arith.divf %9, %10 : vector<16x1xf32>
    %cst_4 = arith.constant 9.99999974E-6 : f32
    %12 = vector.broadcast %cst_4 : f32 to vector<16x1xf32>
    %13 = arith.addf %11, %12 : vector<16x1xf32>
    %14 = math.rsqrt %13 : vector<16x1xf32>
    %15 = vector.broadcast %14 : vector<16x1xf32> to vector<16x128xf32>
    %16 = arith.mulf %6, %15 : vector<16x128xf32>
    %c0_5 = arith.constant 0 : index
    %c0_6 = arith.constant 0 : index
    %17 = vector.load %arg4[%c0_5, %c0_6] : memref<1x128xf32, #tpu.memory_space<vmem>>, vector<1x128xf32>
    %18 = vector.broadcast %17 : vector<1x128xf32> to vector<16x128xf32>
    %19 = arith.mulf %16, %18 : vector<16x128xf32>
    %c0_7 = arith.constant 0 : index
    %c0_8 = arith.constant 0 : index
    %20 = vector.load %arg5[%c0_7, %c0_8] : memref<1x128xf32, #tpu.memory_space<vmem>>, vector<1x128xf32>
    %21 = vector.broadcast %20 : vector<1x128xf32> to vector<16x128xf32>
    %22 = arith.addf %19, %21 : vector<16x128xf32>
    %c0_9 = arith.constant 0 : index
    %c0_10 = arith.constant 0 : index
    %23 = vector.load %arg10[%c0_9, %c0_10] : memref<16x128xf32, #tpu.memory_space<vmem>>, vector<16x128xf32>
    tpu.vector_store %arg10[%c0_9, %c0_10], %22 {strides = array<i32>} : memref<16x128xf32, #tpu.memory_space<vmem>>, vector<16x128xf32>,
    %c0_11 = arith.constant 0 : index
    %c0_12 = arith.constant 0 : index
    %24 = vector.load %arg2[%c0_11, %c0_12] : memref<16x128xf32, #tpu.memory_space<vmem>>, vector<16x128xf32>
    %cst_13 = arith.constant dense<0.000000e+00> : vector<16xf32>
    %25 = vector.multi_reduction <add>, %24, %cst_13 [1] : vector<16x128xf32> to vector<16xf32>
    %26 = vector.shape_cast %25 : vector<16xf32> to vector<16x1xf32>
    %cst_14 = arith.constant 1.280000e+02 : f32
    %27 = vector.broadcast %cst_14 : f32 to vector<16x1xf32>
    %28 = arith.divf %26, %27 : vector<16x1xf32>
    %29 = vector.broadcast %28 : vector<16x1xf32> to vector<16x128xf32>
    %30 = arith.subf %24, %29 : vector<16x128xf32>
    %31 = arith.mulf %30, %30 : vector<16x128xf32>
    %cst_15 = arith.constant dense<0.000000e+00> : vector<16xf32>
    %32 = vector.multi_reduction <add>, %31, %cst_15 [1] : vector<16x128xf32> to vector<16xf32>
    %33 = vector.shape_cast %32 : vector<16xf32> to vector<16x1xf32>
    %cst_16 = arith.constant 1.280000e+02 : f32
    %34 = vector.broadcast %cst_16 : f32 to vector<16x1xf32>
    %35 = arith.divf %33, %34 : vector<16x1xf32>
    %cst_17 = arith.constant 9.99999974E-6 : f32
    %36 = vector.broadcast %cst_17 : f32 to vector<16x1xf32>
    %37 = arith.addf %35, %36 : vector<16x1xf32>
    %38 = math.rsqrt %37 : vector<16x1xf32>
    %39 = vector.broadcast %38 : vector<16x1xf32> to vector<16x128xf32>
    %40 = arith.mulf %30, %39 : vector<16x128xf32>
    %c0_18 = arith.constant 0 : index
    %c0_19 = arith.constant 0 : index
    %41 = vector.load %arg6[%c0_18, %c0_19] : memref<1x128xf32, #tpu.memory_space<vmem>>, vector<1x128xf32>
    %42 = vector.broadcast %41 : vector<1x128xf32> to vector<16x128xf32>
    %43 = arith.mulf %40, %42 : vector<16x128xf32>
    %c0_20 = arith.constant 0 : index
    %c0_21 = arith.constant 0 : index
    %44 = vector.load %arg7[%c0_20, %c0_21] : memref<1x128xf32, #tpu.memory_space<vmem>>, vector<1x128xf32>
    %45 = vector.broadcast %44 : vector<1x128xf32> to vector<16x128xf32>
    %46 = arith.addf %43, %45 : vector<16x128xf32>
    %c0_22 = arith.constant 0 : index
    %c0_23 = arith.constant 0 : index
    %47 = vector.load %arg11[%c0_22, %c0_23] : memref<16x128xf32, #tpu.memory_space<vmem>>, vector<16x128xf32>
    tpu.vector_store %arg11[%c0_22, %c0_23], %46 {strides = array<i32>} : memref<16x128xf32, #tpu.memory_space<vmem>>, vector<16x128xf32>,
    %c0_24 = arith.constant 0 : index
    %c0_25 = arith.constant 0 : index
    %48 = vector.load %arg3[%c0_24, %c0_25] : memref<16x128xf32, #tpu.memory_space<vmem>>, vector<16x128xf32>
    %cst_26 = arith.constant dense<0.000000e+00> : vector<16xf32>
    %49 = vector.multi_reduction <add>, %48, %cst_26 [1] : vector<16x128xf32> to vector<16xf32>
    %50 = vector.shape_cast %49 : vector<16xf32> to vector<16x1xf32>
    %cst_27 = arith.constant 1.280000e+02 : f32
    %51 = vector.broadcast %cst_27 : f32 to vector<16x1xf32>
    %52 = arith.divf %50, %51 : vector<16x1xf32>
    %53 = vector.broadcast %52 : vector<16x1xf32> to vector<16x128xf32>
    %54 = arith.subf %48, %53 : vector<16x128xf32>
    %55 = arith.mulf %54, %54 : vector<16x128xf32>
    %cst_28 = arith.constant dense<0.000000e+00> : vector<16xf32>
    %56 = vector.multi_reduction <add>, %55, %cst_28 [1] : vector<16x128xf32> to vector<16xf32>
    %57 = vector.shape_cast %56 : vector<16xf32> to vector<16x1xf32>
    %cst_29 = arith.constant 1.280000e+02 : f32
    %58 = vector.broadcast %cst_29 : f32 to vector<16x1xf32>
    %59 = arith.divf %57, %58 : vector<16x1xf32>
    %cst_30 = arith.constant 9.99999974E-6 : f32
    %60 = vector.broadcast %cst_30 : f32 to vector<16x1xf32>
    %61 = arith.addf %59, %60 : vector<16x1xf32>
    %62 = math.rsqrt %61 : vector<16x1xf32>
    %63 = vector.broadcast %62 : vector<16x1xf32> to vector<16x128xf32>
    %64 = arith.mulf %54, %63 : vector<16x128xf32>
    %c0_31 = arith.constant 0 : index
    %c0_32 = arith.constant 0 : index
    %65 = vector.load %arg8[%c0_31, %c0_32] : memref<1x128xf32, #tpu.memory_space<vmem>>, vector<1x128xf32>
    %66 = vector.broadcast %65 : vector<1x128xf32> to vector<16x128xf32>
    %67 = arith.mulf %64, %66 : vector<16x128xf32>
    %c0_33 = arith.constant 0 : index
    %c0_34 = arith.constant 0 : index
    %68 = vector.load %arg9[%c0_33, %c0_34] : memref<1x128xf32, #tpu.memory_space<vmem>>, vector<1x128xf32>
    %69 = vector.broadcast %68 : vector<1x128xf32> to vector<16x128xf32>
    %70 = arith.addf %67, %69 : vector<16x128xf32>
    %c0_35 = arith.constant 0 : index
    %c0_36 = arith.constant 0 : index
    %71 = vector.load %arg12[%c0_35, %c0_36] : memref<16x128xf32, #tpu.memory_space<vmem>>, vector<16x128xf32>
    tpu.vector_store %arg12[%c0_35, %c0_36], %70 {strides = array<i32>} : memref<16x128xf32, #tpu.memory_space<vmem>>, vector<16x128xf32>,
    return
  }
  func.func @transform_0(%arg0: i32) -> (i32, i32) {
    %c0_i32 = arith.constant 0 : i32
    %c0_i32_0 = arith.constant 0 : i32
    return %arg0, %c0_i32 : i32, i32
  }
  func.func @transform_1(%arg0: i32) -> (i32, i32) {
    %c0_i32 = arith.constant 0 : i32
    %c0_i32_0 = arith.constant 0 : i32
    return %arg0, %c0_i32 : i32, i32
  }
  func.func @transform_2(%arg0: i32) -> (i32, i32) {
    %c0_i32 = arith.constant 0 : i32
    %c0_i32_0 = arith.constant 0 : i32
    return %arg0, %c0_i32 : i32, i32
  }
  func.func @transform_3(%arg0: i32) -> (i32, i32) {
    %c0_i32 = arith.constant 0 : i32
    %c0_i32_0 = arith.constant 0 : i32
    %c0_i32_1 = arith.constant 0 : i32
    return %c0_i32, %c0_i32_0 : i32, i32
  }
  func.func @transform_4(%arg0: i32) -> (i32, i32) {
    %c0_i32 = arith.constant 0 : i32
    %c0_i32_0 = arith.constant 0 : i32
    %c0_i32_1 = arith.constant 0 : i32
    return %c0_i32, %c0_i32_0 : i32, i32
  }
  func.func @transform_5(%arg0: i32) -> (i32, i32) {
    %c0_i32 = arith.constant 0 : i32
    %c0_i32_0 = arith.constant 0 : i32
    %c0_i32_1 = arith.constant 0 : i32
    return %c0_i32, %c0_i32_0 : i32, i32
  }
  func.func @transform_6(%arg0: i32) -> (i32, i32) {
    %c0_i32 = arith.constant 0 : i32
    %c0_i32_0 = arith.constant 0 : i32
    %c0_i32_1 = arith.constant 0 : i32
    return %c0_i32, %c0_i32_0 : i32, i32
  }
  func.func @transform_7(%arg0: i32) -> (i32, i32) {
    %c0_i32 = arith.constant 0 : i32
    %c0_i32_0 = arith.constant 0 : i32
    %c0_i32_1 = arith.constant 0 : i32
    return %c0_i32, %c0_i32_0 : i32, i32
  }
  func.func @transform_8(%arg0: i32) -> (i32, i32) {
    %c0_i32 = arith.constant 0 : i32
    %c0_i32_0 = arith.constant 0 : i32
    %c0_i32_1 = arith.constant 0 : i32
    return %c0_i32, %c0_i32_0 : i32, i32
  }
  func.func @transform_9(%arg0: i32) -> (i32, i32) {
    %c0_i32 = arith.constant 0 : i32
    %c0_i32_0 = arith.constant 0 : i32
    return %arg0, %c0_i32 : i32, i32
  }
  func.func @transform_10(%arg0: i32) -> (i32, i32) {
    %c0_i32 = arith.constant 0 : i32
    %c0_i32_0 = arith.constant 0 : i32
    return %arg0, %c0_i32 : i32, i32
  }
  func.func @transform_11(%arg0: i32) -> (i32, i32) {
    %c0_i32 = arith.constant 0 : i32
    %c0_i32_0 = arith.constant 0 : i32
    return %arg0, %c0_i32 : i32, i32
  }
}

</mosaic_0001>

<llo_original>
// kernel: tpu_custom_call.1
$region0: #{tpu_custom_call.1}
  #allocation0 [shape = 'u32[]', space=smem, size = 0x4, offset = 0x4, fixed_abs, tag = 'smem constant byte address 0x4 - core index']
  #allocation1 [shape = 'u32[144,128]{1,0:T(1,128)}', space=vmem, size = 0x12000, scoped, tag = 'internal scratch']
  %s0 = inlined_call_operand.hbm [shape: f32[16,128], index: 0, kind: input, shape index: {}]
  %s1 = inlined_call_operand.hbm [shape: f32[16,128], index: 1, kind: input, shape index: {}]
  %s2 = inlined_call_operand.hbm [shape: f32[16,128], index: 2, kind: input, shape index: {}]
  %s3 = inlined_call_operand.vmem [shape: f32[1,128], index: 3, kind: input, shape index: {}]
  %s4 = inlined_call_operand.vmem [shape: f32[1,128], index: 4, kind: input, shape index: {}]
  %s5 = inlined_call_operand.vmem [shape: f32[1,128], index: 5, kind: input, shape index: {}]
  %s6 = inlined_call_operand.vmem [shape: f32[1,128], index: 6, kind: input, shape index: {}]
  %s7 = inlined_call_operand.vmem [shape: f32[1,128], index: 7, kind: input, shape index: {}]
  %s8 = inlined_call_operand.vmem [shape: f32[1,128], index: 8, kind: input, shape index: {}]
  %s9 = inlined_call_operand.hbm [shape: f32[16,128], index: 9, kind: output, shape index: {0}]
  %s10 = inlined_call_operand.hbm [shape: f32[16,128], index: 10, kind: output, shape index: {1}]
  %s11 = inlined_call_operand.hbm [shape: f32[16,128], index: 11, kind: output, shape index: {2}]
  %12 = xla_tuple %s9, %s10, %s11
  %s13 = sld [smem:[#allocation0]]
  $region74: #{tpu_custom_call.1} parent=0
    _
  %s15 = ssub.s32 1, %s13
  %s16 = scalar_select 0, %s15, %s13
  $region1: #{tpu_custom_call.1} parent=0
    #allocation2 [shape = 'u8[8192]{0}', space=vmem, size = 0x2000, scoped, tag = 'input window, operand 0, single buffered']
    #allocation3 [shape = 's32[1]{0}', space=sflag, size = 0x4, scoped, tag = 'scoped memory for tpu_custom_call.1']
    #allocation4 [shape = 's32[1]{0}', space=sflag, size = 0x4, scoped, tag = 'scoped memory for tpu_custom_call.1']
    #allocation5 [shape = 'u8[8192]{0}', space=vmem, size = 0x2000, scoped, tag = 'input window, operand 1, single buffered']
    #allocation6 [shape = 's32[1]{0}', space=sflag, size = 0x4, scoped, tag = 'scoped memory for tpu_custom_call.1']
    #allocation7 [shape = 'u8[8192]{0}', space=vmem, size = 0x2000, scoped, tag = 'input window, operand 2, single buffered']
    #allocation8 [shape = 'u8[8192]{0}', space=vmem, size = 0x2000, scoped, tag = 'output window, operand 0, single buffered']
    #allocation9 [shape = 'u8[8192]{0}', space=vmem, size = 0x2000, scoped, tag = 'output window, operand 1, single buffered']
    #allocation10 [shape = 's32[1]{0}', space=sflag, size = 0x4, scoped, tag = 'scoped memory for tpu_custom_call.1']
    #allocation11 [shape = 'u8[8192]{0}', space=vmem, size = 0x2000, scoped, tag = 'output window, operand 2, single buffered']
    %17 = vsyncpa [#allocation3], 0
    %18 = vsyncpa [#allocation6], 0
    %19 = vsyncpa [#allocation4], 0
    %20 = vsyncpa [#allocation10], 0
    // Predicated region
    $region2: #{tpu_custom_call.1} parent=1 // pred_check
      _
    $region3: #{tpu_custom_call.1} parent=1 // pred_check_branch
      %22 = sbr.rel (0) target = $region5
    $region4: #{tpu_custom_call.1} parent=1 // pred_region
      %s24 = ssub.s32 256, 256
      %25 = vsyncadd [#allocation3], %s24
      %s26 = sshll.u32 [#allocation2], 4
      %s27 = int_to_ptr.vmem [resolvable:$true] %s26
      %32 = dma.hbm_to_vmem [thread:$0]  %s0, 256, %s27, [#allocation3], 128, 128, 8
    $region5: #{tpu_custom_call.1} parent=1 // pred_fallthru
      _
    // Predicated region
    $region6: #{tpu_custom_call.1} parent=1 // pred_check
      _
    $region7: #{tpu_custom_call.1} parent=1 // pred_check_branch
      %34 = sbr.rel (0) target = $region9
    $region8: #{tpu_custom_call.1} parent=1 // pred_region
      %s36 = ssub.s32 256, 256
      %37 = vsyncadd [#allocation6], %s36
      %s38 = sshll.u32 [#allocation5], 4
      %s39 = int_to_ptr.vmem [resolvable:$true] %s38
      %44 = dma.hbm_to_vmem [thread:$0]  %s1, 256, %s39, [#allocation6], 128, 128, 8
    $region9: #{tpu_custom_call.1} parent=1 // pred_fallthru
      _
    // Predicated region
    $region10: #{tpu_custom_call.1} parent=1 // pred_check
      _
    $region11: #{tpu_custom_call.1} parent=1 // pred_check_branch
      %46 = sbr.rel (0) target = $region13
    $region12: #{tpu_custom_call.1} parent=1 // pred_region
      %s48 = ssub.s32 256, 256
      %49 = vsyncadd [#allocation6], %s48
      %s50 = sshll.u32 [#allocation7], 4
      %s51 = int_to_ptr.vmem [resolvable:$true] %s50
      %56 = dma.hbm_to_vmem [thread:$0]  %s2, 256, %s51, [#allocation6], 128, 128, 8
    $region13: #{tpu_custom_call.1} parent=1 // pred_fallthru
      _
    // Predicated region
    $region14: #{tpu_custom_call.1} parent=1 // pred_check
      _
    $region15: #{tpu_custom_call.1} parent=1 // pred_check_branch
      %58 = sbr.rel (0) target = $region17
    $region16: #{tpu_custom_call.1} parent=1 // pred_region
      _
    $region17: #{tpu_custom_call.1} parent=1 // pred_fallthru
      _
    // Predicated region
    $region18: #{tpu_custom_call.1} parent=1 // pred_check
      _
    $region19: #{tpu_custom_call.1} parent=1 // pred_check_branch
      %60 = sbr.rel (0) target = $region21
    $region20: #{tpu_custom_call.1} parent=1 // pred_region
      _
    $region21: #{tpu_custom_call.1} parent=1 // pred_fallthru
      _
    // Predicated region
    $region22: #{tpu_custom_call.1} parent=1 // pred_check
      _
    $region23: #{tpu_custom_call.1} parent=1 // pred_check_branch
      %62 = sbr.rel (0) target = $region25
    $region24: #{tpu_custom_call.1} parent=1 // pred_region
      _
    $region25: #{tpu_custom_call.1} parent=1 // pred_fallthru
      _
    // Predicated region
    $region26: #{tpu_custom_call.1} parent=1 // pred_check
      _
    $region27: #{tpu_custom_call.1} parent=1 // pred_check_branch
      %64 = sbr.rel (0) target = $region29
    $region28: #{tpu_custom_call.1} parent=1 // pred_region
      _
    $region29: #{tpu_custom_call.1} parent=1 // pred_fallthru
      _
    // Predicated region
    $region30: #{tpu_custom_call.1} parent=1 // pred_check
      _
    $region31: #{tpu_custom_call.1} parent=1 // pred_check_branch
      %66 = sbr.rel (0) target = $region33
    $region32: #{tpu_custom_call.1} parent=1 // pred_region
      _
    $region33: #{tpu_custom_call.1} parent=1 // pred_fallthru
      _
    // Predicated region
    $region34: #{tpu_custom_call.1} parent=1 // pred_check
      _
    $region35: #{tpu_custom_call.1} parent=1 // pred_check_branch
      %68 = sbr.rel (0) target = $region37
    $region36: #{tpu_custom_call.1} parent=1 // pred_region
      _
    $region37: #{tpu_custom_call.1} parent=1 // pred_fallthru
      _
    // Predicated region
    $region38: #{tpu_custom_call.1} parent=1 // pred_check
      _
    $region39: #{tpu_custom_call.1} parent=1 // pred_check_branch
      %70 = sbr.rel (0) target = $region41
    $region40: #{tpu_custom_call.1} parent=1 // pred_region
      %71 = dma.done [#allocation3], 256
    $region41: #{tpu_custom_call.1} parent=1 // pred_fallthru
      _
    // Predicated region
    $region42: #{tpu_custom_call.1} parent=1 // pred_check
      _
    $region43: #{tpu_custom_call.1} parent=1 // pred_check_branch
      %73 = sbr.rel (0) target = $region45
    $region44: #{tpu_custom_call.1} parent=1 // pred_region
      %74 = dma.done [#allocation6], 256
    $region45: #{tpu_custom_call.1} parent=1 // pred_fallthru
      _
    // Predicated region
    $region46: #{tpu_custom_call.1} parent=1 // pred_check
      _
    $region47: #{tpu_custom_call.1} parent=1 // pred_check_branch
      %76 = sbr.rel (0) target = $region49
    $region48: #{tpu_custom_call.1} parent=1 // pred_region
      %77 = dma.done [#allocation6], 256
    $region49: #{tpu_custom_call.1} parent=1 // pred_fallthru
      _
    %v78 = vld [vmem:[#allocation2] sm:$0xff]
    %v79 = vld [vmem:[#allocation2 + $0x8] sm:$0xff]
    %80 = vadd.xlane.f32.xlu0 %v78
    %v81 = vpop.xlane.xlu0 %80
    %82 = vadd.xlane.f32.xlu0 %v79
    %v83 = vpop.xlane.xlu0 %82
    %v84 = vrcp.pop 128.0
    %v85 = vmul.f32 %v81, %v84
    %v86 = vmul.f32 %v83, %v84
    %v87 = vsub.f32 %v78, %v85
    %v88 = vsub.f32 %v79, %v86
    %v89 = vmul.f32 %v87, %v87
    %v90 = vmul.f32 %v88, %v88
    %91 = vadd.xlane.f32.xlu0 %v89
    %v92 = vpop.xlane.xlu0 %91
    %93 = vadd.xlane.f32.xlu0 %v90
    %v94 = vpop.xlane.xlu0 %93
    %v95 = vmul.f32 %v92, %v84
    %v96 = vmul.f32 %v94, %v84
    %v97 = vadd.f32 %v95, 1e-05
    %v98 = vadd.f32 %v96, 1e-05
    %v99 = vrsqrt.pop %v97
    %v100 = vrsqrt.pop %v98
    %v101 = vmul.f32 %v87, %v99
    %v102 = vmul.f32 %v88, %v100
    %v103 = vld [vmem:[%s3] sm:$0x1]
    %v105 = vlaneseq
    %v106 = vshrl.u32 %v105, 7
    %v107 = vsub.s32 0, %v106
    %v108 = vrot.slane %v103, %v107
    %v110 = vmul.f32 %v101, %v108
    %v111 = vmul.f32 %v102, %v108
    %v112 = vld [vmem:[%s4] sm:$0x1]
    %v114 = vlaneseq
    %v115 = vshrl.u32 %v114, 7
    %v116 = vsub.s32 0, %v115
    %v117 = vrot.slane %v112, %v116
    %v119 = vadd.f32 %v110, %v117
    %v120 = vadd.f32 %v111, %v117
    %121 = vst [vmem:[#allocation8] sm:$0xff] %v119
    %122 = vst [vmem:[#allocation8 + $0x8] sm:$0xff] %v120
    %v123 = vld [vmem:[#allocation5] sm:$0xff]
    %v124 = vld [vmem:[#allocation5 + $0x8] sm:$0xff]
    %125 = vadd.xlane.f32.xlu0 %v123
    %v126 = vpop.xlane.xlu0 %125
    %127 = vadd.xlane.f32.xlu0 %v124
    %v128 = vpop.xlane.xlu0 %127
    %v129 = vmul.f32 %v126, %v84
    %v130 = vmul.f32 %v128, %v84
    %v131 = vsub.f32 %v123, %v129
    %v132 = vsub.f32 %v124, %v130
    %v133 = vmul.f32 %v131, %v131
    %v134 = vmul.f32 %v132, %v132
    %135 = vadd.xlane.f32.xlu0 %v133
    %v136 = vpop.xlane.xlu0 %135
    %137 = vadd.xlane.f32.xlu0 %v134
    %v138 = vpop.xlane.xlu0 %137
    %v139 = vmul.f32 %v136, %v84
    %v140 = vmul.f32 %v138, %v84
    %v141 = vadd.f32 %v139, 1e-05
    %v142 = vadd.f32 %v140, 1e-05
    %v143 = vrsqrt.pop %v141
    %v144 = vrsqrt.pop %v142
    %v145 = vmul.f32 %v131, %v143
    %v146 = vmul.f32 %v132, %v144
    %v147 = vld [vmem:[%s5] sm:$0x1]
    %v149 = vlaneseq
    %v150 = vshrl.u32 %v149, 7
    %v151 = vsub.s32 0, %v150
    %v152 = vrot.slane %v147, %v151
    %v154 = vmul.f32 %v145, %v152
    %v155 = vmul.f32 %v146, %v152
    %v156 = vld [vmem:[%s6] sm:$0x1]
    %v158 = vlaneseq
    %v159 = vshrl.u32 %v158, 7
    %v160 = vsub.s32 0, %v159
    %v161 = vrot.slane %v156, %v160
    %v163 = vadd.f32 %v154, %v161
    %v164 = vadd.f32 %v155, %v161
    %165 = vst [vmem:[#allocation9] sm:$0xff] %v163
    %166 = vst [vmem:[#allocation9 + $0x8] sm:$0xff] %v164
    %v167 = vld [vmem:[#allocation7] sm:$0xff]
    %v168 = vld [vmem:[#allocation7 + $0x8] sm:$0xff]
    %169 = vadd.xlane.f32.xlu0 %v167
    %v170 = vpop.xlane.xlu0 %169
    %171 = vadd.xlane.f32.xlu0 %v168
    %v172 = vpop.xlane.xlu0 %171
    %v173 = vmul.f32 %v170, %v84
    %v174 = vmul.f32 %v172, %v84
    %v175 = vsub.f32 %v167, %v173
    %v176 = vsub.f32 %v168, %v174
    %v177 = vmul.f32 %v175, %v175
    %v178 = vmul.f32 %v176, %v176
    %179 = vadd.xlane.f32.xlu0 %v177
    %v180 = vpop.xlane.xlu0 %179
    %181 = vadd.xlane.f32.xlu0 %v178
    %v182 = vpop.xlane.xlu0 %181
    %v183 = vmul.f32 %v180, %v84
    %v184 = vmul.f32 %v182, %v84
    %v185 = vadd.f32 %v183, 1e-05
    %v186 = vadd.f32 %v184, 1e-05
    %v187 = vrsqrt.pop %v185
    %v188 = vrsqrt.pop %v186
    %v189 = vmul.f32 %v175, %v187
    %v190 = vmul.f32 %v176, %v188
    %v191 = vld [vmem:[%s7] sm:$0x1]
    %v193 = vlaneseq
    %v194 = vshrl.u32 %v193, 7
    %v195 = vsub.s32 0, %v194
    %v196 = vrot.slane %v191, %v195
    %v198 = vmul.f32 %v189, %v196
    %v199 = vmul.f32 %v190, %v196
    %v200 = vld [vmem:[%s8] sm:$0x1]
    %v202 = vlaneseq
    %v203 = vshrl.u32 %v202, 7
    %v204 = vsub.s32 0, %v203
    %v205 = vrot.slane %v200, %v204
    %v207 = vadd.f32 %v198, %v205
    %v208 = vadd.f32 %v199, %v205
    %209 = vst [vmem:[#allocation11] sm:$0xff] %v207
    %210 = vst [vmem:[#allocation11 + $0x8] sm:$0xff] %v208
    // Predicated region
    $region50: #{tpu_custom_call.1} parent=1 // pred_check
      _
    $region51: #{tpu_custom_call.1} parent=1 // pred_check_branch
      %212 = sbr.rel (0) target = $region53
    $region52: #{tpu_custom_call.1} parent=1 // pred_region
      %s214 = ssub.s32 256, 256
      %215 = vsyncadd [#allocation4], %s214
      %s216 = sshll.u32 [#allocation8], 4
      %s217 = int_to_ptr.vmem [resolvable:$true] %s216
      %222 = dma.vmem_to_hbm [thread:$0]  %s217, 256, %s9, [#allocation4], 128, 128, 8
    $region53: #{tpu_custom_call.1} parent=1 // pred_fallthru
      _
    // Predicated region
    $region54: #{tpu_custom_call.1} parent=1 // pred_check
      _
    $region55: #{tpu_custom_call.1} parent=1 // pred_check_branch
      %224 = sbr.rel (0) target = $region57
    $region56: #{tpu_custom_call.1} parent=1 // pred_region
      %s226 = ssub.s32 256, 256
      %227 = vsyncadd [#allocation10], %s226
      %s228 = sshll.u32 [#allocation9], 4
      %s229 = int_to_ptr.vmem [resolvable:$true] %s228
      %234 = dma.vmem_to_hbm [thread:$0]  %s229, 256, %s10, [#allocation10], 128, 128, 8
    $region57: #{tpu_custom_call.1} parent=1 // pred_fallthru
      _
    // Predicated region
    $region58: #{tpu_custom_call.1} parent=1 // pred_check
      _
    $region59: #{tpu_custom_call.1} parent=1 // pred_check_branch
      %236 = sbr.rel (0) target = $region61
    $region60: #{tpu_custom_call.1} parent=1 // pred_region
      %s238 = ssub.s32 256, 256
      %239 = vsyncadd [#allocation10], %s238
      %s240 = sshll.u32 [#allocation11], 4
      %s241 = int_to_ptr.vmem [resolvable:$true] %s240
      %246 = dma.vmem_to_hbm [thread:$0]  %s241, 256, %s11, [#allocation10], 128, 128, 8
    $region61: #{tpu_custom_call.1} parent=1 // pred_fallthru
      _
    // Predicated region
    $region62: #{tpu_custom_call.1} parent=1 // pred_check
      _
    $region63: #{tpu_custom_call.1} parent=1 // pred_check_branch
      %248 = sbr.rel (0) target = $region65
    $region64: #{tpu_custom_call.1} parent=1 // pred_region
      %249 = dma.done [#allocation4], 256
    $region65: #{tpu_custom_call.1} parent=1 // pred_fallthru
      _
    // Predicated region
    $region66: #{tpu_custom_call.1} parent=1 // pred_check
      _
    $region67: #{tpu_custom_call.1} parent=1 // pred_check_branch
      %251 = sbr.rel (0) target = $region69
    $region68: #{tpu_custom_call.1} parent=1 // pred_region
      %252 = dma.done [#allocation10], 256
    $region69: #{tpu_custom_call.1} parent=1 // pred_fallthru
      _
    // Predicated region
    $region70: #{tpu_custom_call.1} parent=1 // pred_check
      _
    $region71: #{tpu_custom_call.1} parent=1 // pred_check_branch
      %254 = sbr.rel (0) target = $region73
    $region72: #{tpu_custom_call.1} parent=1 // pred_region
      %255 = dma.done [#allocation10], 256
    $region73: #{tpu_custom_call.1} parent=1 // pred_fallthru
      _
    %256 = vsyncpa [#allocation3], 1
    %257 = vsyncpa [#allocation6], 1
    %258 = vsyncpa [#allocation4], 1
    %259 = vsyncpa [#allocation10], 1

</llo_original>
